<compile_context>
chip_gen: v6e
topology: v6e:2x2x1
jax: 0.10.0
libtpu: 0.0.40
codegen_flags: <defaults>
</compile_context>

<pallas_src>
import jax
import jax.numpy as jnp
from jax import lax
from jax.experimental import pallas as pl
from jax.experimental.pallas import tpu as pltpu


def _encoder_kernel(x_ref, w0_ref, b0_ref, w1_ref, b1_ref, w2_ref, b2_ref,
                    o_ref, s0, s1, s2):
    """Fused 3-layer conv encoder for one batch element.

    x_ref : (L, 1)        input sequence (seq on sublanes, single channel)
    w0_ref: (K0, 1, C)    layer-0 taps      b0_ref: (1, C)
    w1_ref: (K1, C, C)    layer-1 taps      b1_ref: (1, C)
    w2_ref: (K2, 1, C)    layer-2 taps      b2_ref: (1, 1)
    o_ref : (L//4, 1)     output (Cout == 1, Flatten is a reshape outside)
    s0/s1/s2: VMEM scratch holding each layer's zero-padded input.
    """
    f32 = jnp.float32
    L = x_ref.shape[0]
    C = w0_ref.shape[2]
    K0, K1, K2 = w0_ref.shape[0], w1_ref.shape[0], w2_ref.shape[0]
    p0, p1, p2 = (K0 - 1) // 2, (K1 - 1) // 2, (K2 - 1) // 2
    L2, L4 = L // 2, L // 4

    # ---- layer 0: Conv1d(1 -> C, K0, pad=p0, stride=2) + ReLU  (VPU only) ----
    s0[pl.ds(0, p0), :] = jnp.zeros((p0, 1), f32)          # top halo
    s0[pl.ds(p0 + L, p0), :] = jnp.zeros((p0, 1), f32)     # bottom halo
    s0[pl.ds(p0, L), :] = x_ref[...]                       # interior
    h1 = jnp.broadcast_to(b0_ref[...], (L2, C))            # bias-initialized acc
    for k in range(K0):                                    # static unroll
        xk = s0[pl.ds(k, L2, stride=2), :]                 # (L2, 1) strided read
        h1 = h1 + xk * w0_ref[k]                           # (L2,1)*(1,C) outer
    h1 = jnp.maximum(h1, 0.0)

    # ---- layer 1: Conv1d(C -> C, K1, pad=p1, stride=2) + ReLU  (MXU) ----
    s1[pl.ds(0, p1), :] = jnp.zeros((p1, C), f32)
    s1[pl.ds(p1 + L2, p1), :] = jnp.zeros((p1, C), f32)
    s1[pl.ds(p1, L2), :] = h1
    acc = jnp.broadcast_to(b1_ref[...], (L4, C))
    for k in range(K1):
        hk = s1[pl.ds(k, L4, stride=2), :]                 # (L4, C)
        acc = acc + jnp.dot(hk, w1_ref[k], preferred_element_type=f32)
    h2 = jnp.maximum(acc, 0.0)

    # ---- layer 2: Conv1d(C -> 1, K2, pad=p2, stride=1)  (VPU + lane reduce) ----
    s2[pl.ds(0, p2), :] = jnp.zeros((p2, C), f32)
    s2[pl.ds(p2 + L4, p2), :] = jnp.zeros((p2, C), f32)
    s2[pl.ds(p2, L4), :] = h2
    acc2 = jnp.zeros((L4, C), f32)
    for k in range(K2):
        acc2 = acc2 + s2[pl.ds(k, L4), :] * w2_ref[k]      # (L4,C)*(1,C)
    out = jnp.sum(acc2, axis=1, keepdims=True) + b2_ref[...]   # (L4, 1)
    o_ref[...] = out.astype(o_ref.dtype)


def my_encoder_forward(x, packed):
    """Forward pass. x: (B, L) or (B, 1, L) (PyTorch NCL). Returns (B, L//4)."""
    if x.ndim == 3:                      # torch unsqueeze branch -> squeeze here
        x = x[:, 0, :]
    B, L = x.shape
    assert L % 4 == 0, "fused kernel assumes L divisible by 4"
    w0p, b0r, w1p, b1r, w2p, b2r = packed
    C = w0p.shape[2]
    K0, K1, K2 = w0p.shape[0], w1p.shape[0], w2p.shape[0]
    L2, L4 = L // 2, L // 4

    x3 = x.reshape(B, L, 1).astype(jnp.float32)

    out = pl.pallas_call(
        _encoder_kernel,
        out_shape=jax.ShapeDtypeStruct((B, L4, 1), jnp.float32),
        grid=(B,),
        in_specs=[
            pl.BlockSpec((None, L, 1), lambda b: (b, 0, 0)),    # per-batch slab
            pl.BlockSpec((K0, 1, C), lambda b: (0, 0, 0)),      # layer-0 taps
            pl.BlockSpec((1, C), lambda b: (0, 0)),
            pl.BlockSpec((K1, C, C), lambda b: (0, 0, 0)),      # layer-1 taps
            pl.BlockSpec((1, C), lambda b: (0, 0)),
            pl.BlockSpec((K2, 1, C), lambda b: (0, 0, 0)),      # layer-2 taps
            pl.BlockSpec((1, 1), lambda b: (0, 0)),
        ],
        out_specs=pl.BlockSpec((None, L4, 1), lambda b: (b, 0, 0)),
        scratch_shapes=[
            pltpu.VMEM((L + (K0 - 1), 1), jnp.float32),         # padded layer-0 in
            pltpu.VMEM((L2 + (K1 - 1), C), jnp.float32),        # padded layer-1 in
            pltpu.VMEM((L4 + (K2 - 1), C), jnp.float32),        # padded layer-2 in
        ],
        compiler_params=pltpu.CompilerParams(
            dimension_semantics=("parallel",)),                 # v7x: 2 TCs share B
    )(x3, w0p, b0r, w1p, b1r, w2p, b2r)
    return out.reshape(B, L4)                                   # Flatten (Cout == 1)


def init_params(key, nlayers=3, nchannels=16):
    """PyTorch-layout params, Conv1d default init (uniform +-1/sqrt(fan_in))."""
    layers = []
    for i in range(nlayers - 1):
        inchannels = 1 if i == 0 else nchannels
        layers.append(dict(cin=inchannels, cout=nchannels, k=5, pad=2,
                           stride=2, relu=True))
    layers.append(dict(cin=nchannels, cout=1, k=3, pad=1, stride=1, relu=False))

    params = []
    for cfg in layers:
        key, kw, kb = jax.random.split(key, 3)
        fan_in = cfg["cin"] * cfg["k"]
        bound = 1.0 / jnp.sqrt(jnp.float32(fan_in))
        w = jax.random.uniform(kw, (cfg["cout"], cfg["cin"], cfg["k"]),
                               jnp.float32, -bound, bound)
        b = jax.random.uniform(kb, (cfg["cout"],), jnp.float32, -bound, bound)
        params.append((w, b, cfg["stride"], cfg["pad"], cfg["relu"]))
    return params


def pack_params(params):
    """One-time repack of PyTorch-layout weights into the kernel's tap-major layout."""
    (w0, b0, *_), (w1, b1, *_), (w2, b2, *_) = params
    C = w0.shape[0]
    f32 = jnp.float32
    w0p = jnp.transpose(w0, (2, 1, 0)).astype(f32)   # (K0, 1, C)      [k, 0, co]
    w1p = jnp.transpose(w1, (2, 1, 0)).astype(f32)   # (K1, Cin, Cout) [k, ci, co]
    w2p = jnp.transpose(w2, (2, 0, 1)).astype(f32)   # (K2, 1, C)      [k, 0, ci]
    return (w0p, b0.reshape(1, C).astype(f32),
            w1p, b1.reshape(1, C).astype(f32),
            w2p, b2.reshape(1, 1).astype(f32))


def my_encoder_reference(x, params):
    """Pure-JAX reference (lax.conv) for correctness checking."""
    if x.ndim == 2:
        x = x[:, None, :]
    for (w, b, stride, pad, relu) in params:
        x = lax.conv_general_dilated(
            x, w, window_strides=(stride,), padding=[(pad, pad)],
            dimension_numbers=("NCH", "OIH", "NCH"))
        x = x + b[None, :, None]
        if relu:
            x = jnp.maximum(x, 0.0)
    B = x.shape[0]
    return x.reshape(B, -1)


if __name__ == "__main__":
    key = jax.random.PRNGKey(0)
    k_x, k_p = jax.random.split(key)

    B, L = 2, 64
    x = jax.random.normal(k_x, (B, L), jnp.float32)   # 2D input -> unsqueeze branch

    params = init_params(k_p, nlayers=3, nchannels=16)
    packed = pack_params(params)

    fwd = jax.jit(my_encoder_forward)
    out = jax.block_until_ready(fwd(x, packed))

    ref = jax.block_until_ready(my_encoder_reference(x, params))
    assert out.shape == (B, L // 4), out.shape
    assert jnp.allclose(out, ref, atol=1e-4, rtol=1e-4), "mismatch vs reference"

    print("KERNEL_OK")
</pallas_src>

<mosaic_0001>
module attributes {stable_mosaic.version = 11 : i64} {
  func.func @_encoder_kernel(%arg0: i32, %arg1: memref<1x64x1xf32, #tpu.memory_space<vmem>>, %arg2: memref<5x1x16xf32, #tpu.memory_space<vmem>>, %arg3: memref<1x16xf32, #tpu.memory_space<vmem>>, %arg4: memref<5x16x16xf32, #tpu.memory_space<vmem>>, %arg5: memref<1x16xf32, #tpu.memory_space<vmem>>, %arg6: memref<3x1x16xf32, #tpu.memory_space<vmem>>, %arg7: memref<1x1xf32, #tpu.memory_space<vmem>>, %arg8: memref<1x16x1xf32, #tpu.memory_space<vmem>>, %arg9: memref<68x1xf32, #tpu.memory_space<vmem>>, %arg10: memref<36x16xf32, #tpu.memory_space<vmem>>, %arg11: memref<18x16xf32, #tpu.memory_space<vmem>>) attributes {dimension_semantics = [#tpu.dimension_semantics<parallel>], iteration_bounds = array<i64: 2>, scalar_prefetch = 0 : i64, scratch_operands = 3 : i64, tpu.core_type = #tpu.core_type<tc>, window_params = [{transform_indices = @transform_0, window_bounds = array<i64: 1, 64, 1>}, {pipeline_mode = #tpu.pipeline_mode<synchronous>, transform_indices = @transform_1, window_bounds = array<i64: 5, 1, 16>}, {pipeline_mode = #tpu.pipeline_mode<synchronous>, transform_indices = @transform_2, window_bounds = array<i64: 1, 16>}, {pipeline_mode = #tpu.pipeline_mode<synchronous>, transform_indices = @transform_3, window_bounds = array<i64: 5, 16, 16>}, {pipeline_mode = #tpu.pipeline_mode<synchronous>, transform_indices = @transform_4, window_bounds = array<i64: 1, 16>}, {pipeline_mode = #tpu.pipeline_mode<synchronous>, transform_indices = @transform_5, window_bounds = array<i64: 3, 1, 16>}, {pipeline_mode = #tpu.pipeline_mode<synchronous>, transform_indices = @transform_6, window_bounds = array<i64: 1, 1>}, {transform_indices = @transform_7, window_bounds = array<i64: 1, 16, 1>}]} {
    %cst = arith.constant 0.000000e+00 : f32
    %0 = vector.broadcast %cst : f32 to vector<2x1xf32>
    %c0 = arith.constant 0 : index
    %c0_0 = arith.constant 0 : index
    %1 = vector.load %arg9[%c0, %c0_0] : memref<68x1xf32, #tpu.memory_space<vmem>>, vector<2x1xf32>
    tpu.vector_store %arg9[%c0, %c0_0], %0 {strides = array<i32>} : memref<68x1xf32, #tpu.memory_space<vmem>>, vector<2x1xf32>,
    %cst_1 = arith.constant 0.000000e+00 : f32
    %2 = vector.broadcast %cst_1 : f32 to vector<2x1xf32>
    %c66 = arith.constant 66 : index
    %c0_2 = arith.constant 0 : index
    %3 = vector.load %arg9[%c66, %c0_2] : memref<68x1xf32, #tpu.memory_space<vmem>>, vector<2x1xf32>
    tpu.vector_store %arg9[%c66, %c0_2], %2 {strides = array<i32>} : memref<68x1xf32, #tpu.memory_space<vmem>>, vector<2x1xf32>,
    %c0_3 = arith.constant 0 : index
    %c0_4 = arith.constant 0 : index
    %c0_5 = arith.constant 0 : index
    %4 = vector.load %arg1[%c0_3, %c0_4, %c0_5] : memref<1x64x1xf32, #tpu.memory_space<vmem>>, vector<1x64x1xf32>
    %5 = vector.shape_cast %4 : vector<1x64x1xf32> to vector<64x1xf32>
    %c2 = arith.constant 2 : index
    %c0_6 = arith.constant 0 : index
    %6 = vector.load %arg9[%c2, %c0_6] : memref<68x1xf32, #tpu.memory_space<vmem>>, vector<64x1xf32>
    tpu.vector_store %arg9[%c2, %c0_6], %5 {strides = array<i32>} : memref<68x1xf32, #tpu.memory_space<vmem>>, vector<64x1xf32>,
    %c0_7 = arith.constant 0 : index
    %c0_8 = arith.constant 0 : index
    %7 = vector.load %arg3[%c0_7, %c0_8] : memref<1x16xf32, #tpu.memory_space<vmem>>, vector<1x16xf32>
    %8 = vector.shape_cast %7 : vector<1x16xf32> to vector<1x16xf32>
    %9 = vector.broadcast %8 : vector<1x16xf32> to vector<32x16xf32>
    %c0_9 = arith.constant 0 : index
    %c0_10 = arith.constant 0 : index
    %10 = tpu.strided_load %arg9[%c0_9, %c0_10] {strides = array<i32: 2, 1>} : memref<68x1xf32, #tpu.memory_space<vmem>>, vector<32x1xf32>
    %c0_11 = arith.constant 0 : index
    %c0_12 = arith.constant 0 : index
    %c0_13 = arith.constant 0 : index
    %11 = vector.load %arg2[%c0_11, %c0_12, %c0_13] : memref<5x1x16xf32, #tpu.memory_space<vmem>>, vector<1x1x16xf32>
    %12 = vector.shape_cast %11 : vector<1x1x16xf32> to vector<1x16xf32>
    %13 = vector.broadcast %10 : vector<32x1xf32> to vector<32x16xf32>
    %14 = vector.broadcast %12 : vector<1x16xf32> to vector<32x16xf32>
    %15 = arith.mulf %13, %14 : vector<32x16xf32>
    %16 = arith.addf %9, %15 : vector<32x16xf32>
    %c1 = arith.constant 1 : index
    %c0_14 = arith.constant 0 : index
    %17 = tpu.strided_load %arg9[%c1, %c0_14] {strides = array<i32: 2, 1>} : memref<68x1xf32, #tpu.memory_space<vmem>>, vector<32x1xf32>
    %c1_15 = arith.constant 1 : index
    %c0_16 = arith.constant 0 : index
    %c0_17 = arith.constant 0 : index
    %18 = vector.load %arg2[%c1_15, %c0_16, %c0_17] : memref<5x1x16xf32, #tpu.memory_space<vmem>>, vector<1x1x16xf32>
    %19 = vector.shape_cast %18 : vector<1x1x16xf32> to vector<1x16xf32>
    %20 = vector.broadcast %17 : vector<32x1xf32> to vector<32x16xf32>
    %21 = vector.broadcast %19 : vector<1x16xf32> to vector<32x16xf32>
    %22 = arith.mulf %20, %21 : vector<32x16xf32>
    %23 = arith.addf %16, %22 : vector<32x16xf32>
    %c2_18 = arith.constant 2 : index
    %c0_19 = arith.constant 0 : index
    %24 = tpu.strided_load %arg9[%c2_18, %c0_19] {strides = array<i32: 2, 1>} : memref<68x1xf32, #tpu.memory_space<vmem>>, vector<32x1xf32>
    %c2_20 = arith.constant 2 : index
    %c0_21 = arith.constant 0 : index
    %c0_22 = arith.constant 0 : index
    %25 = vector.load %arg2[%c2_20, %c0_21, %c0_22] : memref<5x1x16xf32, #tpu.memory_space<vmem>>, vector<1x1x16xf32>
    %26 = vector.shape_cast %25 : vector<1x1x16xf32> to vector<1x16xf32>
    %27 = vector.broadcast %24 : vector<32x1xf32> to vector<32x16xf32>
    %28 = vector.broadcast %26 : vector<1x16xf32> to vector<32x16xf32>
    %29 = arith.mulf %27, %28 : vector<32x16xf32>
    %30 = arith.addf %23, %29 : vector<32x16xf32>
    %c3 = arith.constant 3 : index
    %c0_23 = arith.constant 0 : index
    %31 = tpu.strided_load %arg9[%c3, %c0_23] {strides = array<i32: 2, 1>} : memref<68x1xf32, #tpu.memory_space<vmem>>, vector<32x1xf32>
    %c3_24 = arith.constant 3 : index
    %c0_25 = arith.constant 0 : index
    %c0_26 = arith.constant 0 : index
    %32 = vector.load %arg2[%c3_24, %c0_25, %c0_26] : memref<5x1x16xf32, #tpu.memory_space<vmem>>, vector<1x1x16xf32>
    %33 = vector.shape_cast %32 : vector<1x1x16xf32> to vector<1x16xf32>
    %34 = vector.broadcast %31 : vector<32x1xf32> to vector<32x16xf32>
    %35 = vector.broadcast %33 : vector<1x16xf32> to vector<32x16xf32>
    %36 = arith.mulf %34, %35 : vector<32x16xf32>
    %37 = arith.addf %30, %36 : vector<32x16xf32>
    %c4 = arith.constant 4 : index
    %c0_27 = arith.constant 0 : index
    %38 = tpu.strided_load %arg9[%c4, %c0_27] {strides = array<i32: 2, 1>} : memref<68x1xf32, #tpu.memory_space<vmem>>, vector<32x1xf32>
    %c4_28 = arith.constant 4 : index
    %c0_29 = arith.constant 0 : index
    %c0_30 = arith.constant 0 : index
    %39 = vector.load %arg2[%c4_28, %c0_29, %c0_30] : memref<5x1x16xf32, #tpu.memory_space<vmem>>, vector<1x1x16xf32>
    %40 = vector.shape_cast %39 : vector<1x1x16xf32> to vector<1x16xf32>
    %41 = vector.broadcast %38 : vector<32x1xf32> to vector<32x16xf32>
    %42 = vector.broadcast %40 : vector<1x16xf32> to vector<32x16xf32>
    %43 = arith.mulf %41, %42 : vector<32x16xf32>
    %44 = arith.addf %37, %43 : vector<32x16xf32>
    %cst_31 = arith.constant 0.000000e+00 : f32
    %45 = vector.broadcast %cst_31 : f32 to vector<32x16xf32>
    %46 = arith.maximumf %44, %45 : vector<32x16xf32>
    %cst_32 = arith.constant 0.000000e+00 : f32
    %47 = vector.broadcast %cst_32 : f32 to vector<2x16xf32>
    %c0_33 = arith.constant 0 : index
    %c0_34 = arith.constant 0 : index
    %48 = vector.load %arg10[%c0_33, %c0_34] : memref<36x16xf32, #tpu.memory_space<vmem>>, vector<2x16xf32>
    tpu.vector_store %arg10[%c0_33, %c0_34], %47 {strides = array<i32>} : memref<36x16xf32, #tpu.memory_space<vmem>>, vector<2x16xf32>,
    %cst_35 = arith.constant 0.000000e+00 : f32
    %49 = vector.broadcast %cst_35 : f32 to vector<2x16xf32>
    %c34 = arith.constant 34 : index
    %c0_36 = arith.constant 0 : index
    %50 = vector.load %arg10[%c34, %c0_36] : memref<36x16xf32, #tpu.memory_space<vmem>>, vector<2x16xf32>
    tpu.vector_store %arg10[%c34, %c0_36], %49 {strides = array<i32>} : memref<36x16xf32, #tpu.memory_space<vmem>>, vector<2x16xf32>,
    %c2_37 = arith.constant 2 : index
    %c0_38 = arith.constant 0 : index
    %51 = vector.load %arg10[%c2_37, %c0_38] : memref<36x16xf32, #tpu.memory_space<vmem>>, vector<32x16xf32>
    tpu.vector_store %arg10[%c2_37, %c0_38], %46 {strides = array<i32>} : memref<36x16xf32, #tpu.memory_space<vmem>>, vector<32x16xf32>,
    %c0_39 = arith.constant 0 : index
    %c0_40 = arith.constant 0 : index
    %52 = vector.load %arg5[%c0_39, %c0_40] : memref<1x16xf32, #tpu.memory_space<vmem>>, vector<1x16xf32>
    %53 = vector.shape_cast %52 : vector<1x16xf32> to vector<1x16xf32>
    %54 = vector.broadcast %53 : vector<1x16xf32> to vector<16x16xf32>
    %c0_41 = arith.constant 0 : index
    %c0_42 = arith.constant 0 : index
    %55 = tpu.strided_load %arg10[%c0_41, %c0_42] {strides = array<i32: 2, 1>} : memref<36x16xf32, #tpu.memory_space<vmem>>, vector<16x16xf32>
    %c0_43 = arith.constant 0 : index
    %c0_44 = arith.constant 0 : index
    %c0_45 = arith.constant 0 : index
    %56 = vector.load %arg4[%c0_43, %c0_44, %c0_45] : memref<5x16x16xf32, #tpu.memory_space<vmem>>, vector<1x16x16xf32>
    %57 = vector.shape_cast %56 : vector<1x16x16xf32> to vector<16x16xf32>
    %cst_46 = arith.constant dense<0.000000e+00> : vector<16x16xf32>
    %58 = tpu.matmul %55, %57, %cst_46 {dimension_numbers = #tpu.dot_dimension_numbers<[1], [0], [0], [1], [0, 0, 1, 1], [], []>} : vector<16x16xf32>, vector<16x16xf32>, vector<16x16xf32> -> vector<16x16xf32>
    %59 = arith.addf %54, %58 : vector<16x16xf32>
    %c1_47 = arith.constant 1 : index
    %c0_48 = arith.constant 0 : index
    %60 = tpu.strided_load %arg10[%c1_47, %c0_48] {strides = array<i32: 2, 1>} : memref<36x16xf32, #tpu.memory_space<vmem>>, vector<16x16xf32>
    %c1_49 = arith.constant 1 : index
    %c0_50 = arith.constant 0 : index
    %c0_51 = arith.constant 0 : index
    %61 = vector.load %arg4[%c1_49, %c0_50, %c0_51] : memref<5x16x16xf32, #tpu.memory_space<vmem>>, vector<1x16x16xf32>
    %62 = vector.shape_cast %61 : vector<1x16x16xf32> to vector<16x16xf32>
    %cst_52 = arith.constant dense<0.000000e+00> : vector<16x16xf32>
    %63 = tpu.matmul %60, %62, %cst_52 {dimension_numbers = #tpu.dot_dimension_numbers<[1], [0], [0], [1], [0, 0, 1, 1], [], []>} : vector<16x16xf32>, vector<16x16xf32>, vector<16x16xf32> -> vector<16x16xf32>
    %64 = arith.addf %59, %63 : vector<16x16xf32>
    %c2_53 = arith.constant 2 : index
    %c0_54 = arith.constant 0 : index
    %65 = tpu.strided_load %arg10[%c2_53, %c0_54] {strides = array<i32: 2, 1>} : memref<36x16xf32, #tpu.memory_space<vmem>>, vector<16x16xf32>
    %c2_55 = arith.constant 2 : index
    %c0_56 = arith.constant 0 : index
    %c0_57 = arith.constant 0 : index
    %66 = vector.load %arg4[%c2_55, %c0_56, %c0_57] : memref<5x16x16xf32, #tpu.memory_space<vmem>>, vector<1x16x16xf32>
    %67 = vector.shape_cast %66 : vector<1x16x16xf32> to vector<16x16xf32>
    %cst_58 = arith.constant dense<0.000000e+00> : vector<16x16xf32>
    %68 = tpu.matmul %65, %67, %cst_58 {dimension_numbers = #tpu.dot_dimension_numbers<[1], [0], [0], [1], [0, 0, 1, 1], [], []>} : vector<16x16xf32>, vector<16x16xf32>, vector<16x16xf32> -> vector<16x16xf32>
    %69 = arith.addf %64, %68 : vector<16x16xf32>
    %c3_59 = arith.constant 3 : index
    %c0_60 = arith.constant 0 : index
    %70 = tpu.strided_load %arg10[%c3_59, %c0_60] {strides = array<i32: 2, 1>} : memref<36x16xf32, #tpu.memory_space<vmem>>, vector<16x16xf32>
    %c3_61 = arith.constant 3 : index
    %c0_62 = arith.constant 0 : index
    %c0_63 = arith.constant 0 : index
    %71 = vector.load %arg4[%c3_61, %c0_62, %c0_63] : memref<5x16x16xf32, #tpu.memory_space<vmem>>, vector<1x16x16xf32>
    %72 = vector.shape_cast %71 : vector<1x16x16xf32> to vector<16x16xf32>
    %cst_64 = arith.constant dense<0.000000e+00> : vector<16x16xf32>
    %73 = tpu.matmul %70, %72, %cst_64 {dimension_numbers = #tpu.dot_dimension_numbers<[1], [0], [0], [1], [0, 0, 1, 1], [], []>} : vector<16x16xf32>, vector<16x16xf32>, vector<16x16xf32> -> vector<16x16xf32>
    %74 = arith.addf %69, %73 : vector<16x16xf32>
    %c4_65 = arith.constant 4 : index
    %c0_66 = arith.constant 0 : index
    %75 = tpu.strided_load %arg10[%c4_65, %c0_66] {strides = array<i32: 2, 1>} : memref<36x16xf32, #tpu.memory_space<vmem>>, vector<16x16xf32>
    %c4_67 = arith.constant 4 : index
    %c0_68 = arith.constant 0 : index
    %c0_69 = arith.constant 0 : index
    %76 = vector.load %arg4[%c4_67, %c0_68, %c0_69] : memref<5x16x16xf32, #tpu.memory_space<vmem>>, vector<1x16x16xf32>
    %77 = vector.shape_cast %76 : vector<1x16x16xf32> to vector<16x16xf32>
    %cst_70 = arith.constant dense<0.000000e+00> : vector<16x16xf32>
    %78 = tpu.matmul %75, %77, %cst_70 {dimension_numbers = #tpu.dot_dimension_numbers<[1], [0], [0], [1], [0, 0, 1, 1], [], []>} : vector<16x16xf32>, vector<16x16xf32>, vector<16x16xf32> -> vector<16x16xf32>
    %79 = arith.addf %74, %78 : vector<16x16xf32>
    %cst_71 = arith.constant 0.000000e+00 : f32
    %80 = vector.broadcast %cst_71 : f32 to vector<16x16xf32>
    %81 = arith.maximumf %79, %80 : vector<16x16xf32>
    %cst_72 = arith.constant 0.000000e+00 : f32
    %82 = vector.broadcast %cst_72 : f32 to vector<1x16xf32>
    %c0_73 = arith.constant 0 : index
    %c0_74 = arith.constant 0 : index
    %83 = vector.load %arg11[%c0_73, %c0_74] : memref<18x16xf32, #tpu.memory_space<vmem>>, vector<1x16xf32>
    tpu.vector_store %arg11[%c0_73, %c0_74], %82 {strides = array<i32>} : memref<18x16xf32, #tpu.memory_space<vmem>>, vector<1x16xf32>,
    %cst_75 = arith.constant 0.000000e+00 : f32
    %84 = vector.broadcast %cst_75 : f32 to vector<1x16xf32>
    %c17 = arith.constant 17 : index
    %c0_76 = arith.constant 0 : index
    %85 = vector.load %arg11[%c17, %c0_76] : memref<18x16xf32, #tpu.memory_space<vmem>>, vector<1x16xf32>
    tpu.vector_store %arg11[%c17, %c0_76], %84 {strides = array<i32>} : memref<18x16xf32, #tpu.memory_space<vmem>>, vector<1x16xf32>,
    %c1_77 = arith.constant 1 : index
    %c0_78 = arith.constant 0 : index
    %86 = vector.load %arg11[%c1_77, %c0_78] : memref<18x16xf32, #tpu.memory_space<vmem>>, vector<16x16xf32>
    tpu.vector_store %arg11[%c1_77, %c0_78], %81 {strides = array<i32>} : memref<18x16xf32, #tpu.memory_space<vmem>>, vector<16x16xf32>,
    %cst_79 = arith.constant 0.000000e+00 : f32
    %87 = vector.broadcast %cst_79 : f32 to vector<16x16xf32>
    %c0_80 = arith.constant 0 : index
    %c0_81 = arith.constant 0 : index
    %88 = vector.load %arg11[%c0_80, %c0_81] : memref<18x16xf32, #tpu.memory_space<vmem>>, vector<16x16xf32>
    %c0_82 = arith.constant 0 : index
    %c0_83 = arith.constant 0 : index
    %c0_84 = arith.constant 0 : index
    %89 = vector.load %arg6[%c0_82, %c0_83, %c0_84] : memref<3x1x16xf32, #tpu.memory_space<vmem>>, vector<1x1x16xf32>
    %90 = vector.shape_cast %89 : vector<1x1x16xf32> to vector<1x16xf32>
    %91 = vector.broadcast %90 : vector<1x16xf32> to vector<16x16xf32>
    %92 = arith.mulf %88, %91 : vector<16x16xf32>
    %93 = arith.addf %87, %92 : vector<16x16xf32>
    %c1_85 = arith.constant 1 : index
    %c0_86 = arith.constant 0 : index
    %94 = vector.load %arg11[%c1_85, %c0_86] : memref<18x16xf32, #tpu.memory_space<vmem>>, vector<16x16xf32>
    %c1_87 = arith.constant 1 : index
    %c0_88 = arith.constant 0 : index
    %c0_89 = arith.constant 0 : index
    %95 = vector.load %arg6[%c1_87, %c0_88, %c0_89] : memref<3x1x16xf32, #tpu.memory_space<vmem>>, vector<1x1x16xf32>
    %96 = vector.shape_cast %95 : vector<1x1x16xf32> to vector<1x16xf32>
    %97 = vector.broadcast %96 : vector<1x16xf32> to vector<16x16xf32>
    %98 = arith.mulf %94, %97 : vector<16x16xf32>
    %99 = arith.addf %93, %98 : vector<16x16xf32>
    %c2_90 = arith.constant 2 : index
    %c0_91 = arith.constant 0 : index
    %100 = vector.load %arg11[%c2_90, %c0_91] : memref<18x16xf32, #tpu.memory_space<vmem>>, vector<16x16xf32>
    %c2_92 = arith.constant 2 : index
    %c0_93 = arith.constant 0 : index
    %c0_94 = arith.constant 0 : index
    %101 = vector.load %arg6[%c2_92, %c0_93, %c0_94] : memref<3x1x16xf32, #tpu.memory_space<vmem>>, vector<1x1x16xf32>
    %102 = vector.shape_cast %101 : vector<1x1x16xf32> to vector<1x16xf32>
    %103 = vector.broadcast %102 : vector<1x16xf32> to vector<16x16xf32>
    %104 = arith.mulf %100, %103 : vector<16x16xf32>
    %105 = arith.addf %99, %104 : vector<16x16xf32>
    %cst_95 = arith.constant dense<0.000000e+00> : vector<16xf32>
    %106 = vector.multi_reduction <add>, %105, %cst_95 [1] : vector<16x16xf32> to vector<16xf32>
    %107 = vector.shape_cast %106 : vector<16xf32> to vector<16x1xf32>
    %c0_96 = arith.constant 0 : index
    %c0_97 = arith.constant 0 : index
    %108 = vector.load %arg7[%c0_96, %c0_97] : memref<1x1xf32, #tpu.memory_space<vmem>>, vector<1x1xf32>
    %109 = vector.broadcast %108 : vector<1x1xf32> to vector<16x1xf32>
    %110 = arith.addf %107, %109 : vector<16x1xf32>
    %c0_98 = arith.constant 0 : index
    %c0_99 = arith.constant 0 : index
    %c0_100 = arith.constant 0 : index
    %111 = vector.load %arg8[%c0_98, %c0_99, %c0_100] : memref<1x16x1xf32, #tpu.memory_space<vmem>>, vector<1x16x1xf32>
    %112 = vector.shape_cast %111 : vector<1x16x1xf32> to vector<16x1xf32>
    %113 = vector.shape_cast %110 : vector<16x1xf32> to vector<1x16x1xf32>
    tpu.vector_store %arg8[%c0_98, %c0_99, %c0_100], %113 {strides = array<i32>} : memref<1x16x1xf32, #tpu.memory_space<vmem>>, vector<1x16x1xf32>,
    return
  }
  func.func @transform_0(%arg0: i32) -> (i32, i32, i32) {
    %c0_i32 = arith.constant 0 : i32
    %c0_i32_0 = arith.constant 0 : i32
    %c0_i32_1 = arith.constant 0 : i32
    return %arg0, %c0_i32, %c0_i32_0 : i32, i32, i32
  }
  func.func @transform_1(%arg0: i32) -> (i32, i32, i32) {
    %c0_i32 = arith.constant 0 : i32
    %c0_i32_0 = arith.constant 0 : i32
    %c0_i32_1 = arith.constant 0 : i32
    %c0_i32_2 = arith.constant 0 : i32
    return %c0_i32, %c0_i32_0, %c0_i32_1 : i32, i32, i32
  }
  func.func @transform_2(%arg0: i32) -> (i32, i32) {
    %c0_i32 = arith.constant 0 : i32
    %c0_i32_0 = arith.constant 0 : i32
    %c0_i32_1 = arith.constant 0 : i32
    return %c0_i32, %c0_i32_0 : i32, i32
  }
  func.func @transform_3(%arg0: i32) -> (i32, i32, i32) {
    %c0_i32 = arith.constant 0 : i32
    %c0_i32_0 = arith.constant 0 : i32
    %c0_i32_1 = arith.constant 0 : i32
    %c0_i32_2 = arith.constant 0 : i32
    return %c0_i32, %c0_i32_0, %c0_i32_1 : i32, i32, i32
  }
  func.func @transform_4(%arg0: i32) -> (i32, i32) {
    %c0_i32 = arith.constant 0 : i32
    %c0_i32_0 = arith.constant 0 : i32
    %c0_i32_1 = arith.constant 0 : i32
    return %c0_i32, %c0_i32_0 : i32, i32
  }
  func.func @transform_5(%arg0: i32) -> (i32, i32, i32) {
    %c0_i32 = arith.constant 0 : i32
    %c0_i32_0 = arith.constant 0 : i32
    %c0_i32_1 = arith.constant 0 : i32
    %c0_i32_2 = arith.constant 0 : i32
    return %c0_i32, %c0_i32_0, %c0_i32_1 : i32, i32, i32
  }
  func.func @transform_6(%arg0: i32) -> (i32, i32) {
    %c0_i32 = arith.constant 0 : i32
    %c0_i32_0 = arith.constant 0 : i32
    %c0_i32_1 = arith.constant 0 : i32
    return %c0_i32, %c0_i32_0 : i32, i32
  }
  func.func @transform_7(%arg0: i32) -> (i32, i32, i32) {
    %c0_i32 = arith.constant 0 : i32
    %c0_i32_0 = arith.constant 0 : i32
    %c0_i32_1 = arith.constant 0 : i32
    return %arg0, %c0_i32, %c0_i32_0 : i32, i32, i32
  }
}

</mosaic_0001>

<llo_original>
// kernel: my_encoder_forward.1
$region0: #{my_encoder_forward.1}
  #allocation0 [shape = 'u32[]', space=smem, size = 0x4, offset = 0x4, fixed_abs, tag = 'smem constant byte address 0x4 - core index']
  #allocation1 [shape = 'u32[144,128]{1,0:T(1,128)}', space=vmem, size = 0x12000, scoped, tag = 'internal scratch']
  #allocation2 [shape = 'f32[68,1]{1,0:T(8,128)}', space=vmem, size = 0x9000, scoped, tag = 'scratch operand']
  #allocation3 [shape = 'f32[36,16]{1,0:T(8,128)}', space=vmem, size = 0x5000, scoped, tag = 'scratch operand']
  #allocation4 [shape = 'f32[18,16]{1,0:T(8,128)}', space=vmem, size = 0x3000, scoped, tag = 'scratch operand']
  #allocation5 [shape = 'f32[1,1]{1,0:T(1,128)S(1)}', space=vmem, size = 0x200, scoped, tag = 'scoped memory for my_encoder_forward.1']
  %s0 = inlined_call_operand.vmem [shape: f32[2,64,1], index: 0, kind: input, shape index: {}]
  %s1 = inlined_call_operand.vmem [shape: f32[5,1,16], index: 1, kind: input, shape index: {}]
  %s2 = inlined_call_operand.vmem [shape: f32[1,16], index: 2, kind: input, shape index: {}]
  %s3 = inlined_call_operand.vmem [shape: f32[5,16,16], index: 3, kind: input, shape index: {}]
  %s4 = inlined_call_operand.vmem [shape: f32[1,16], index: 4, kind: input, shape index: {}]
  %s5 = inlined_call_operand.vmem [shape: f32[3,1,16], index: 5, kind: input, shape index: {}]
  %s6 = inlined_call_operand.<no memory space> [shape: f32[1,1], index: 6, kind: input, shape index: {}]
  %s7 = inlined_call_operand.vmem [shape: f32[2,16,1], index: 7, kind: output, shape index: {}]
  %s8 = sld [smem:[#allocation0]]
  $region61: #{my_encoder_forward.1} parent=0
    _
  %s10 = ssub.s32 1, %s8
  %s11 = scalar_select 0, %s10, %s8
  %v12 = vstv %s6
  %13 = vst [vmem:[#allocation5] sm:$0x1] %v12
  loop: start=0, step=1, limit=4
  $region2: #{my_encoder_forward.1} parent=0 // loop_pre_header
    _
  $region3: #{my_encoder_forward.1} parent=0 // loop_header
    %s15 = sphi 0, %s19
    %p16 = scmp.ge.s32.totalorder %s15, 4
    %s25 = sphi 0, %s27
    %s28 = sphi 0, %s25
    %s29 = sphi 0, %s28
    %s45 = sphi 0, %s29
    %s49 = sphi 0, %s49
    %s51 = sphi 0, %s49
    %s52 = sphi 0, %s51
    %s66 = sphi 0, %s52
    %s70 = sphi 0, %s70
    %s72 = sphi 0, %s70
    %s73 = sphi 0, %s72
    %s87 = sphi 0, %s73
    %s91 = sphi 0, %s91
    %s93 = sphi 0, %s91
    %s94 = sphi 0, %s93
    %s108 = sphi 0, %s94
    %s112 = sphi 0, %s112
    %s114 = sphi 0, %s112
    %s115 = sphi 0, %s114
    %s129 = sphi 0, %s115
    %s133 = sphi 0, %s133
    %s135 = sphi 0, %s133
    %s136 = sphi 0, %s135
    %s150 = sphi 0, %s136
    %s154 = sphi 0, %s154
    %s156 = sphi 0, %s154
    %s157 = sphi 0, %s156
    %s171 = sphi 0, %s157
    %s177 = sphi 0, %s179
    %s180 = sphi 0, %s177
    %s181 = sphi 0, %s180
    %s197 = sphi 0, %s181
  $region4: #{my_encoder_forward.1} parent=0 // loop_header_branch
    %18 = sbr.rel (%p16) target = $region8
  $region5: #{my_encoder_forward.1} parent=0 // loop_body
    %s20 = ssub.s32 %s15, 1
    %s21 = ssub.s32 %s15, 2
    %s22 = sadd.s32 %s15, 1
    %s23 = ssub.s32 %s15, %s22
    %p24 = scmp.eq.s32.totalorder %s23, 0
    %s26 = sadd.s32 %s25, 1
    %s27 = scalar_select %p24, %s25, %s26
    %p30 = pneg %p24
    %p31 = scmp.eq.s32.totalorder %s15, 1
    %p32 = por %p30, %p31
    %p33 = scmp.ne.s32.totalorder %s25, %s28
    %p34 = scmp.eq.s32.totalorder %s15, 0
    %p35 = por %p33, %p34
    %p36 = scmp.ne.s32.totalorder %s25, %s28
    %p37 = scmp.eq.s32.totalorder %s20, 1
    %p38 = por %p36, %p37
    %p39 = scmp.ne.s32.totalorder %s28, %s29
    %p40 = scmp.eq.s32.totalorder %s20, 0
    %p41 = por %p39, %p40
    %p42 = scmp.ne.s32.totalorder %s28, %s29
    %p43 = scmp.eq.s32.totalorder %s21, 1
    %p44 = por %p42, %p43
    %p46 = scmp.ne.s32.totalorder %s29, %s45
    %p47 = scmp.eq.s32.totalorder %s21, 0
    %p48 = por %p46, %p47
    %s50 = sadd.s32 %s49, 1
    %p53 = scmp.eq.s32.totalorder %s15, 1
    %p54 = scmp.ne.s32.totalorder %s49, %s51
    %p55 = scmp.eq.s32.totalorder %s15, 0
    %p56 = por %p54, %p55
    %p57 = scmp.ne.s32.totalorder %s49, %s51
    %p58 = scmp.eq.s32.totalorder %s20, 1
    %p59 = por %p57, %p58
    %p60 = scmp.ne.s32.totalorder %s51, %s52
    %p61 = scmp.eq.s32.totalorder %s20, 0
    %p62 = por %p60, %p61
    %p63 = scmp.ne.s32.totalorder %s51, %s52
    %p64 = scmp.eq.s32.totalorder %s21, 1
    %p65 = por %p63, %p64
    %p67 = scmp.ne.s32.totalorder %s52, %s66
    %p68 = scmp.eq.s32.totalorder %s21, 0
    %p69 = por %p67, %p68
    %s71 = sadd.s32 %s70, 1
    %p74 = scmp.eq.s32.totalorder %s15, 1
    %p75 = scmp.ne.s32.totalorder %s70, %s72
    %p76 = scmp.eq.s32.totalorder %s15, 0
    %p77 = por %p75, %p76
    %p78 = scmp.ne.s32.totalorder %s70, %s72
    %p79 = scmp.eq.s32.totalorder %s20, 1
    %p80 = por %p78, %p79
    %p81 = scmp.ne.s32.totalorder %s72, %s73
    %p82 = scmp.eq.s32.totalorder %s20, 0
    %p83 = por %p81, %p82
    %p84 = scmp.ne.s32.totalorder %s72, %s73
    %p85 = scmp.eq.s32.totalorder %s21, 1
    %p86 = por %p84, %p85
    %p88 = scmp.ne.s32.totalorder %s73, %s87
    %p89 = scmp.eq.s32.totalorder %s21, 0
    %p90 = por %p88, %p89
    %s92 = sadd.s32 %s91, 1
    %p95 = scmp.eq.s32.totalorder %s15, 1
    %p96 = scmp.ne.s32.totalorder %s91, %s93
    %p97 = scmp.eq.s32.totalorder %s15, 0
    %p98 = por %p96, %p97
    %p99 = scmp.ne.s32.totalorder %s91, %s93
    %p100 = scmp.eq.s32.totalorder %s20, 1
    %p101 = por %p99, %p100
    %p102 = scmp.ne.s32.totalorder %s93, %s94
    %p103 = scmp.eq.s32.totalorder %s20, 0
    %p104 = por %p102, %p103
    %p105 = scmp.ne.s32.totalorder %s93, %s94
    %p106 = scmp.eq.s32.totalorder %s21, 1
    %p107 = por %p105, %p106
    %p109 = scmp.ne.s32.totalorder %s94, %s108
    %p110 = scmp.eq.s32.totalorder %s21, 0
    %p111 = por %p109, %p110
    %s113 = sadd.s32 %s112, 1
    %p116 = scmp.eq.s32.totalorder %s15, 1
    %p117 = scmp.ne.s32.totalorder %s112, %s114
    %p118 = scmp.eq.s32.totalorder %s15, 0
    %p119 = por %p117, %p118
    %p120 = scmp.ne.s32.totalorder %s112, %s114
    %p121 = scmp.eq.s32.totalorder %s20, 1
    %p122 = por %p120, %p121
    %p123 = scmp.ne.s32.totalorder %s114, %s115
    %p124 = scmp.eq.s32.totalorder %s20, 0
    %p125 = por %p123, %p124
    %p126 = scmp.ne.s32.totalorder %s114, %s115
    %p127 = scmp.eq.s32.totalorder %s21, 1
    %p128 = por %p126, %p127
    %p130 = scmp.ne.s32.totalorder %s115, %s129
    %p131 = scmp.eq.s32.totalorder %s21, 0
    %p132 = por %p130, %p131
    %s134 = sadd.s32 %s133, 1
    %p137 = scmp.eq.s32.totalorder %s15, 1
    %p138 = scmp.ne.s32.totalorder %s133, %s135
    %p139 = scmp.eq.s32.totalorder %s15, 0
    %p140 = por %p138, %p139
    %p141 = scmp.ne.s32.totalorder %s133, %s135
    %p142 = scmp.eq.s32.totalorder %s20, 1
    %p143 = por %p141, %p142
    %p144 = scmp.ne.s32.totalorder %s135, %s136
    %p145 = scmp.eq.s32.totalorder %s20, 0
    %p146 = por %p144, %p145
    %p147 = scmp.ne.s32.totalorder %s135, %s136
    %p148 = scmp.eq.s32.totalorder %s21, 1
    %p149 = por %p147, %p148
    %p151 = scmp.ne.s32.totalorder %s136, %s150
    %p152 = scmp.eq.s32.totalorder %s21, 0
    %p153 = por %p151, %p152
    %s155 = sadd.s32 %s154, 1
    %p158 = scmp.eq.s32.totalorder %s15, 1
    %p159 = scmp.ne.s32.totalorder %s154, %s156
    %p160 = scmp.eq.s32.totalorder %s15, 0
    %p161 = por %p159, %p160
    %p162 = scmp.ne.s32.totalorder %s154, %s156
    %p163 = scmp.eq.s32.totalorder %s20, 1
    %p164 = por %p162, %p163
    %p165 = scmp.ne.s32.totalorder %s156, %s157
    %p166 = scmp.eq.s32.totalorder %s20, 0
    %p167 = por %p165, %p166
    %p168 = scmp.ne.s32.totalorder %s156, %s157
    %p169 = scmp.eq.s32.totalorder %s21, 1
    %p170 = por %p168, %p169
    %p172 = scmp.ne.s32.totalorder %s157, %s171
    %p173 = scmp.eq.s32.totalorder %s21, 0
    %p174 = por %p172, %p173
    %s175 = ssub.s32 %s15, %s22
    %p176 = scmp.eq.s32.totalorder %s175, 0
    %s178 = sadd.s32 %s177, 1
    %s179 = scalar_select %p176, %s177, %s178
    %p182 = pneg %p176
    %p183 = scmp.eq.s32.totalorder %s15, 1
    %p184 = por %p182, %p183
    %p185 = scmp.ne.s32.totalorder %s177, %s180
    %p186 = scmp.eq.s32.totalorder %s15, 0
    %p187 = por %p185, %p186
    %p188 = scmp.ne.s32.totalorder %s177, %s180
    %p189 = scmp.eq.s32.totalorder %s20, 1
    %p190 = por %p188, %p189
    %p191 = scmp.ne.s32.totalorder %s180, %s181
    %p192 = scmp.eq.s32.totalorder %s20, 0
    %p193 = por %p191, %p192
    %p194 = scmp.ne.s32.totalorder %s180, %s181
    %p195 = scmp.eq.s32.totalorder %s21, 1
    %p196 = por %p194, %p195
    %p198 = scmp.ne.s32.totalorder %s181, %s197
    %p199 = scmp.eq.s32.totalorder %s21, 0
    %p200 = por %p198, %p199
    %p201 = scmp.le.s32.totalorder 1, %s15
    %p202 = scmp.lt.s32.totalorder %s15, 3
    %p203 = pnand %p201, %p202
    %p204 = pneg %p203
    // Predicated region
    $region9: #{my_encoder_forward.1} parent=5 // pred_check
      _
    $region10: #{my_encoder_forward.1} parent=5 // pred_check_branch
      %206 = sbr.rel (%p203) target = $region12
    $region11: #{my_encoder_forward.1} parent=5 // pred_region
      %s207 = ssub.s32 %s15, 1
      // Predicated region
      $region13: #{my_encoder_forward.1} parent=11 // pred_check
        %p208 = pneg %p62
      $region14: #{my_encoder_forward.1} parent=11 // pred_check_branch
        %210 = sbr.rel (%p208) target = $region16
      $region15: #{my_encoder_forward.1} parent=11 // pred_region
        _
      $region16: #{my_encoder_forward.1} parent=11 // pred_fallthru
        _
      // Predicated region
      $region17: #{my_encoder_forward.1} parent=11 // pred_check
        %p211 = pneg %p83
      $region18: #{my_encoder_forward.1} parent=11 // pred_check_branch
        %213 = sbr.rel (%p211) target = $region20
      $region19: #{my_encoder_forward.1} parent=11 // pred_region
        _
      $region20: #{my_encoder_forward.1} parent=11 // pred_fallthru
        _
      // Predicated region
      $region21: #{my_encoder_forward.1} parent=11 // pred_check
        %p214 = pneg %p104
      $region22: #{my_encoder_forward.1} parent=11 // pred_check_branch
        %216 = sbr.rel (%p214) target = $region24
      $region23: #{my_encoder_forward.1} parent=11 // pred_region
        _
      $region24: #{my_encoder_forward.1} parent=11 // pred_fallthru
        _
      // Predicated region
      $region25: #{my_encoder_forward.1} parent=11 // pred_check
        %p217 = pneg %p125
      $region26: #{my_encoder_forward.1} parent=11 // pred_check_branch
        %219 = sbr.rel (%p217) target = $region28
      $region27: #{my_encoder_forward.1} parent=11 // pred_region
        _
      $region28: #{my_encoder_forward.1} parent=11 // pred_fallthru
        _
      // Predicated region
      $region29: #{my_encoder_forward.1} parent=11 // pred_check
        %p220 = pneg %p146
      $region30: #{my_encoder_forward.1} parent=11 // pred_check_branch
        %222 = sbr.rel (%p220) target = $region32
      $region31: #{my_encoder_forward.1} parent=11 // pred_region
        _
      $region32: #{my_encoder_forward.1} parent=11 // pred_fallthru
        _
      // Predicated region
      $region33: #{my_encoder_forward.1} parent=11 // pred_check
        %p223 = pneg %p167
      $region34: #{my_encoder_forward.1} parent=11 // pred_check_branch
        %225 = sbr.rel (%p223) target = $region36
      $region35: #{my_encoder_forward.1} parent=11 // pred_region
        _
      $region36: #{my_encoder_forward.1} parent=11 // pred_fallthru
        _
    $region12: #{my_encoder_forward.1} parent=5 // pred_fallthru
      _
    %p226 = scmp.lt.s32.totalorder %s15, 2
    // Predicated region
    $region37: #{my_encoder_forward.1} parent=5 // pred_check
      %p227 = pneg %p226
    $region38: #{my_encoder_forward.1} parent=5 // pred_check_branch
      %229 = sbr.rel (%p227) target = $region40
    $region39: #{my_encoder_forward.1} parent=5 // pred_region
      // Predicated region
      $region41: #{my_encoder_forward.1} parent=39 // pred_check
        %p230 = pneg %p35
      $region42: #{my_encoder_forward.1} parent=39 // pred_check_branch
        %232 = sbr.rel (%p230) target = $region44
      $region43: #{my_encoder_forward.1} parent=39 // pred_region
        %p233 = scmp.lt.s32.totalorder %s15, 1
        %s234 = scalar_select %p233, %s15, 1
        %s235 = smul.addr %s234, 8
        %s236 = smul.addr %s235, 8
        %s237 = scalar_lea.vmem %s0, %s236
      $region44: #{my_encoder_forward.1} parent=39 // pred_fallthru
        _
    $region40: #{my_encoder_forward.1} parent=5 // pred_fallthru
      _
    %p238 = scmp.le.s32.totalorder 1, %s15
    %p239 = scmp.lt.s32.totalorder %s15, 3
    %p240 = pnand %p238, %p239
    %p241 = pneg %p240
    // Predicated region
    $region45: #{my_encoder_forward.1} parent=5 // pred_check
      _
    $region46: #{my_encoder_forward.1} parent=5 // pred_check_branch
      %243 = sbr.rel (%p240) target = $region48
    $region47: #{my_encoder_forward.1} parent=5 // pred_region
      %s244 = ssub.s32 %s15, 1
      %p245 = scmp.lt.s32.totalorder %s20, 1
      %s246 = scalar_select %p245, %s20, 1
      %s247 = smul.addr %s246, 8
      %s248 = smul.addr %s247, 8
      %s249 = scalar_lea.vmem %s0, %s248
      %p250 = pneg %p41
      %p251 = pneg %p38
      %p252 = pneg %p62
      %p253 = pneg %p59
      %p254 = pneg %p83
      %p255 = pneg %p80
      %p256 = pneg %p104
      %p257 = pneg %p101
      %p258 = pneg %p125
      %p259 = pneg %p122
      %p260 = pneg %p146
      %p261 = pneg %p143
      %p262 = pneg %p167
      %p263 = pneg %p164
      %p264 = pneg %p193
      %p265 = pneg %p190
      %p266 = scmp.lt.s32.totalorder %s20, 1
      %s267 = scalar_select %p266, %s20, 1
      %s268 = smul.addr %s267, 2
      %s269 = smul.addr %s268, 8
      %s270 = scalar_lea.vmem %s7, %s269
      %p271 = scmp.lt.s32.totalorder %s20, 1
      %s272 = scalar_select %p271, %s20, 1
      %s273 = smul.addr %s272, 8
      %s274 = smul.addr %s273, 8
      %s275 = scalar_lea.vmem %s0, %s274
      %p276 = scmp.lt.s32.totalorder %s20, 1
      %s277 = scalar_select %p276, %s20, 1
      %s278 = smul.addr %s277, 2
      %s279 = smul.addr %s278, 8
      %s280 = scalar_lea.vmem %s7, %s279
      %vm281 = vcmask 1024
      %282 = vst.msk [vmem:[#allocation2] sm:$0x3] %vm281, 0.0
      %283 = vst.msk [vmem:[#allocation2 + $0x42] sm:$0x3] %vm281, 0.0
      %v284 = vld [vmem:[%s275] sm:$0xff]
      %v285 = vld [vmem:[%s275 + $0x8] sm:$0xff]
      %v286 = vld [vmem:[%s275 + $0x10] sm:$0xff]
      %v287 = vld [vmem:[%s275 + $0x18] sm:$0xff]
      %v288 = vld [vmem:[%s275 + $0x20] sm:$0xff]
      %v289 = vld [vmem:[%s275 + $0x28] sm:$0xff]
      %v290 = vld [vmem:[%s275 + $0x30] sm:$0xff]
      %v291 = vld [vmem:[%s275 + $0x38] sm:$0xff]
      %vm292 = vcmask 7168
      %293 = vst.msk [vmem:[#allocation2 + $0x2] sm:$0xff] %vm292, %v284
      %294 = vst.msk [vmem:[#allocation2 + $0xa] sm:$0xff] %vm292, %v285
      %295 = vst.msk [vmem:[#allocation2 + $0x12] sm:$0xff] %vm292, %v286
      %296 = vst.msk [vmem:[#allocation2 + $0x1a] sm:$0xff] %vm292, %v287
      %297 = vst.msk [vmem:[#allocation2 + $0x22] sm:$0xff] %vm292, %v288
      %298 = vst.msk [vmem:[#allocation2 + $0x2a] sm:$0xff] %vm292, %v289
      %299 = vst.msk [vmem:[#allocation2 + $0x32] sm:$0xff] %vm292, %v290
      %300 = vst.msk [vmem:[#allocation2 + $0x3a] sm:$0xff] %vm292, %v291
      %v301 = vld [vmem:[%s2] sm:$0x1]
      %v303 = vlaneseq
      %v304 = vshrl.u32 %v303, 7
      %v305 = vsub.s32 0, %v304
      %v306 = vrot.slane %v301, %v305
      %v308 = vld [vmem:[#allocation2] ss:$2 sm:$0xff]
      %s309 = scalar_lea.vmem [#allocation2], 16
      %v310 = vld [vmem:[%s309] ss:$2 sm:$0xff]
      %s311 = scalar_lea.vmem [#allocation2], 32
      %v312 = vld [vmem:[%s311] ss:$2 sm:$0xff]
      %s313 = scalar_lea.vmem [#allocation2], 48
      %v314 = vld [vmem:[%s313] ss:$2 sm:$0xff]
      %v315 = vld [vmem:[%s1] sm:$0x1]
      %317 = vset.pattern.permute.xlu0 0
      %318 = vperm.xlu0 %317, %v308
      %v319 = vpop.permute.xlu0 %318
      %322 = vset.pattern.permute.xlu0 0
      %323 = vperm.xlu0 %322, %v310
      %v324 = vpop.permute.xlu0 %323
      %327 = vset.pattern.permute.xlu0 0
      %328 = vperm.xlu0 %327, %v312
      %v329 = vpop.permute.xlu0 %328
      %332 = vset.pattern.permute.xlu0 0
      %333 = vperm.xlu0 %332, %v314
      %v334 = vpop.permute.xlu0 %333
      %v337 = vlaneseq
      %v338 = vshrl.u32 %v337, 7
      %v339 = vsub.s32 0, %v338
      %v340 = vrot.slane %v315, %v339
      %v342 = vmul.f32 %v319, %v340
      %v343 = vmul.f32 %v324, %v340
      %v344 = vmul.f32 %v329, %v340
      %v345 = vmul.f32 %v334, %v340
      %v346 = vadd.f32 %v306, %v342
      %v347 = vadd.f32 %v306, %v343
      %v348 = vadd.f32 %v306, %v344
      %v349 = vadd.f32 %v306, %v345
      %s350 = scalar_lea.vmem [#allocation2], 1
      %v351 = vld [vmem:[%s350] ss:$2 sm:$0xff]
      %s352 = scalar_lea.vmem [#allocation2], 17
      %v353 = vld [vmem:[%s352] ss:$2 sm:$0xff]
      %s354 = scalar_lea.vmem [#allocation2], 33
      %v355 = vld [vmem:[%s354] ss:$2 sm:$0xff]
      %s356 = scalar_lea.vmem [#allocation2], 49
      %v357 = vld [vmem:[%s356] ss:$2 sm:$0xff]
      %s358 = scalar_lea.vmem %s1, 1
      %v359 = vld [vmem:[%s358] sm:$0x1]
      %361 = vset.pattern.permute.xlu0 0
      %362 = vperm.xlu0 %361, %v351
      %v363 = vpop.permute.xlu0 %362
      %366 = vset.pattern.permute.xlu0 0
      %367 = vperm.xlu0 %366, %v353
      %v368 = vpop.permute.xlu0 %367
      %371 = vset.pattern.permute.xlu0 0
      %372 = vperm.xlu0 %371, %v355
      %v373 = vpop.permute.xlu0 %372
      %376 = vset.pattern.permute.xlu0 0
      %377 = vperm.xlu0 %376, %v357
      %v378 = vpop.permute.xlu0 %377
      %v381 = vlaneseq
      %v382 = vshrl.u32 %v381, 7
      %v383 = vsub.s32 0, %v382
      %v384 = vrot.slane %v359, %v383
      %v386 = vmul.f32 %v363, %v384
      %v387 = vmul.f32 %v368, %v384
      %v388 = vmul.f32 %v373, %v384
      %v389 = vmul.f32 %v378, %v384
      %v390 = vadd.f32 %v346, %v386
      %v391 = vadd.f32 %v347, %v387
      %v392 = vadd.f32 %v348, %v388
      %v393 = vadd.f32 %v349, %v389
      %s394 = scalar_lea.vmem [#allocation2], 2
      %v395 = vld [vmem:[%s394] ss:$2 sm:$0xff]
      %s396 = scalar_lea.vmem [#allocation2], 18
      %v397 = vld [vmem:[%s396] ss:$2 sm:$0xff]
      %s398 = scalar_lea.vmem [#allocation2], 34
      %v399 = vld [vmem:[%s398] ss:$2 sm:$0xff]
      %s400 = scalar_lea.vmem [#allocation2], 50
      %v401 = vld [vmem:[%s400] ss:$2 sm:$0xff]
      %s402 = scalar_lea.vmem %s1, 2
      %v403 = vld [vmem:[%s402] sm:$0x1]
      %405 = vset.pattern.permute.xlu0 0
      %406 = vperm.xlu0 %405, %v395
      %v407 = vpop.permute.xlu0 %406
      %410 = vset.pattern.permute.xlu0 0
      %411 = vperm.xlu0 %410, %v397
      %v412 = vpop.permute.xlu0 %411
      %415 = vset.pattern.permute.xlu0 0
      %416 = vperm.xlu0 %415, %v399
      %v417 = vpop.permute.xlu0 %416
      %420 = vset.pattern.permute.xlu0 0
      %421 = vperm.xlu0 %420, %v401
      %v422 = vpop.permute.xlu0 %421
      %v425 = vlaneseq
      %v426 = vshrl.u32 %v425, 7
      %v427 = vsub.s32 0, %v426
      %v428 = vrot.slane %v403, %v427
      %v430 = vmul.f32 %v407, %v428
      %v431 = vmul.f32 %v412, %v428
      %v432 = vmul.f32 %v417, %v428
      %v433 = vmul.f32 %v422, %v428
      %v434 = vadd.f32 %v390, %v430
      %v435 = vadd.f32 %v391, %v431
      %v436 = vadd.f32 %v392, %v432
      %v437 = vadd.f32 %v393, %v433
      %s438 = scalar_lea.vmem [#allocation2], 3
      %v439 = vld [vmem:[%s438] ss:$2 sm:$0xff]
      %s440 = scalar_lea.vmem [#allocation2], 19
      %v441 = vld [vmem:[%s440] ss:$2 sm:$0xff]
      %s442 = scalar_lea.vmem [#allocation2], 35
      %v443 = vld [vmem:[%s442] ss:$2 sm:$0xff]
      %s444 = scalar_lea.vmem [#allocation2], 51
      %v445 = vld [vmem:[%s444] ss:$2 sm:$0xff]
      %s446 = scalar_lea.vmem %s1, 3
      %v447 = vld [vmem:[%s446] sm:$0x1]
      %449 = vset.pattern.permute.xlu0 0
      %450 = vperm.xlu0 %449, %v439
      %v451 = vpop.permute.xlu0 %450
      %454 = vset.pattern.permute.xlu0 0
      %455 = vperm.xlu0 %454, %v441
      %v456 = vpop.permute.xlu0 %455
      %459 = vset.pattern.permute.xlu0 0
      %460 = vperm.xlu0 %459, %v443
      %v461 = vpop.permute.xlu0 %460
      %464 = vset.pattern.permute.xlu0 0
      %465 = vperm.xlu0 %464, %v445
      %v466 = vpop.permute.xlu0 %465
      %v469 = vlaneseq
      %v470 = vshrl.u32 %v469, 7
      %v471 = vsub.s32 0, %v470
      %v472 = vrot.slane %v447, %v471
      %v474 = vmul.f32 %v451, %v472
      %v475 = vmul.f32 %v456, %v472
      %v476 = vmul.f32 %v461, %v472
      %v477 = vmul.f32 %v466, %v472
      %v478 = vadd.f32 %v434, %v474
      %v479 = vadd.f32 %v435, %v475
      %v480 = vadd.f32 %v436, %v476
      %v481 = vadd.f32 %v437, %v477
      %s482 = scalar_lea.vmem [#allocation2], 4
      %v483 = vld [vmem:[%s482] ss:$2 sm:$0xff]
      %s484 = scalar_lea.vmem [#allocation2], 20
      %v485 = vld [vmem:[%s484] ss:$2 sm:$0xff]
      %s486 = scalar_lea.vmem [#allocation2], 36
      %v487 = vld [vmem:[%s486] ss:$2 sm:$0xff]
      %s488 = scalar_lea.vmem [#allocation2], 52
      %v489 = vld [vmem:[%s488] ss:$2 sm:$0xff]
      %s490 = scalar_lea.vmem %s1, 4
      %v491 = vld [vmem:[%s490] sm:$0x1]
      %493 = vset.pattern.permute.xlu0 0
      %494 = vperm.xlu0 %493, %v483
      %v495 = vpop.permute.xlu0 %494
      %498 = vset.pattern.permute.xlu0 0
      %499 = vperm.xlu0 %498, %v485
      %v500 = vpop.permute.xlu0 %499
      %503 = vset.pattern.permute.xlu0 0
      %504 = vperm.xlu0 %503, %v487
      %v505 = vpop.permute.xlu0 %504
      %508 = vset.pattern.permute.xlu0 0
      %509 = vperm.xlu0 %508, %v489
      %v510 = vpop.permute.xlu0 %509
      %v513 = vlaneseq
      %v514 = vshrl.u32 %v513, 7
      %v515 = vsub.s32 0, %v514
      %v516 = vrot.slane %v491, %v515
      %v518 = vmul.f32 %v495, %v516
      %v519 = vmul.f32 %v500, %v516
      %v520 = vmul.f32 %v505, %v516
      %v521 = vmul.f32 %v510, %v516
      %v522 = vadd.f32 %v478, %v518
      %v523 = vadd.f32 %v479, %v519
      %v524 = vadd.f32 %v480, %v520
      %v525 = vadd.f32 %v481, %v521
      %v526 = vmax.f32 %v522, 0.0
      %v527 = vmax.f32 %v523, 0.0
      %v528 = vmax.f32 %v524, 0.0
      %v529 = vmax.f32 %v525, 0.0
      %vm530 = vcmask 123904
      %531 = vst.msk [vmem:[#allocation3] sm:$0x3] %vm530, 0.0
      %532 = vst.msk [vmem:[#allocation3 + $0x22] sm:$0x3] %vm530, 0.0
      %vm533 = vcmask 130048
      %534 = vst.msk [vmem:[#allocation3 + $0x2] sm:$0xff] %vm533, %v526
      %535 = vst.msk [vmem:[#allocation3 + $0xa] sm:$0xff] %vm533, %v527
      %536 = vst.msk [vmem:[#allocation3 + $0x12] sm:$0xff] %vm533, %v528
      %537 = vst.msk [vmem:[#allocation3 + $0x1a] sm:$0xff] %vm533, %v529
      %v538 = vld [vmem:[%s4] sm:$0x1]
      %v540 = vlaneseq
      %v541 = vshrl.u32 %v540, 7
      %v542 = vsub.s32 0, %v541
      %v543 = vrot.slane %v538, %v542
      %v545 = vld [vmem:[#allocation3] ss:$2 sm:$0xff]
      %s546 = scalar_lea.vmem [#allocation3], 16
      %v547 = vld [vmem:[%s546] ss:$2 sm:$0xff]
      %v548 = vld [vmem:[%s3] sm:$0xff]
      %v549 = vld [vmem:[%s3 + $0x8] sm:$0xff]
      %v551 = vsel %vm533, %v545, 0
      %v554 = vsel %vm533, %v547, 0
      %556 = vmatprep.subr.mxu0 0.0
      %557 = vmatpush1.msra.mxu0 0.0
      %558 = vmatprep.subr.mxu0 0.0
      %559 = vmatpush1.msra.mxu0 0.0
      %560 = vmatprep.subr.mxu0 0.0
      %561 = vmatpush1.msra.mxu0 0.0
      %562 = vmatprep.subr.mxu0 0.0
      %563 = vmatpush1.msra.mxu0 0.0
      %564 = vmatprep.subr.mxu0 0.0
      %565 = vmatpush1.msra.mxu0 0.0
      %566 = vmatprep.subr.mxu0 0.0
      %567 = vmatpush1.msra.mxu0 0.0
      %568 = vmatprep.subr.mxu0 0.0
      %569 = vmatpush1.msra.mxu0 0.0
      %570 = vmatprep.subr.mxu0 0.0
      %571 = vmatpush1.msra.mxu0 0.0
      %572 = vmatprep.subr.mxu0 0.0
      %573 = vmatpush1.msra.mxu0 0.0
      %574 = vmatprep.subr.mxu0 0.0
      %575 = vmatpush1.msra.mxu0 0.0
      %576 = vmatprep.subr.mxu0 0.0
      %577 = vmatpush1.msra.mxu0 0.0
      %578 = vmatprep.subr.mxu0 0.0
      %579 = vmatpush1.msra.mxu0 0.0
      %580 = vmatprep.subr.mxu0 0.0
      %581 = vmatpush1.msra.mxu0 0.0
      %582 = vmatprep.subr.mxu0 0.0
      %583 = vmatpush1.msra.mxu0 0.0
      %584 = vmatprep.subr.mxu0 0.0
      %585 = vmatpush1.msra.mxu0 %v549
      %586 = vmatprep.subr.mxu0 0.0
      %587 = vmatpush1.msra.mxu0 %v548
      %588 = vmatprep.subr.mxu0 0.0
      %589 = vmatpush2.msra.mxu0 0.0
      %590 = vmatprep.subr.mxu0 0.0
      %591 = vmatpush2.msra.mxu0 0.0
      %592 = vmatprep.subr.mxu0 0.0
      %593 = vmatpush2.msra.mxu0 0.0
      %594 = vmatprep.subr.mxu0 0.0
      %595 = vmatpush2.msra.mxu0 0.0
      %596 = vmatprep.subr.mxu0 0.0
      %597 = vmatpush2.msra.mxu0 0.0
      %598 = vmatprep.subr.mxu0 0.0
      %599 = vmatpush2.msra.mxu0 0.0
      %600 = vmatprep.subr.mxu0 0.0
      %601 = vmatpush2.msra.mxu0 0.0
      %602 = vmatprep.subr.mxu0 0.0
      %603 = vmatpush2.msra.mxu0 0.0
      %604 = vmatprep.subr.mxu0 0.0
      %605 = vmatpush2.msra.mxu0 0.0
      %606 = vmatprep.subr.mxu0 0.0
      %607 = vmatpush2.msra.mxu0 0.0
      %608 = vmatprep.subr.mxu0 0.0
      %609 = vmatpush2.msra.mxu0 0.0
      %610 = vmatprep.subr.mxu0 0.0
      %611 = vmatpush2.msra.mxu0 0.0
      %612 = vmatprep.subr.mxu0 0.0
      %613 = vmatpush2.msra.mxu0 0.0
      %614 = vmatprep.subr.mxu0 0.0
      %615 = vmatpush2.msra.mxu0 0.0
      %616 = vmatprep.subr.mxu0 0.0
      %617 = vmatpush2.msra.mxu0 0.0
      %618 = vmatprep.subr.mxu0 0.0
      %619 = vmatpush2.msra.mxu0 0.0
      %620 = vmatprep.mubr.f32.mxu0 0.0
      %621 = vmatmul.mubr.f32.gmra.mxu0 %v551
      %v622 = vpop.f32.mrf.mxu0
      %v623 = vadd.f32 0.0, %v622
      %v624 = vpop.f32.mrf.mxu0
      %625 = vmatprep.mubr.f32.mxu0 0.0
      %626 = vmatmul.mubr.f32.gmra.mxu0 %v554
      %v627 = vpop.f32.mrf.mxu0
      %v628 = vadd.f32 0.0, %v627
      %v629 = vpop.f32.mrf.mxu0
      %630 = vdwg.mxu0
      %v631 = vadd.f32 %v543, %v623
      %v632 = vadd.f32 %v543, %v628
      %s633 = scalar_lea.vmem [#allocation3], 1
      %v634 = vld [vmem:[%s633] ss:$2 sm:$0xff]
      %s635 = scalar_lea.vmem [#allocation3], 17
      %v636 = vld [vmem:[%s635] ss:$2 sm:$0xff]
      %s637 = scalar_lea.vmem %s3, 16
      %v638 = vld [vmem:[%s637] sm:$0xff]
      %v639 = vld [vmem:[%s637 + $0x8] sm:$0xff]
      %v641 = vsel %vm533, %v634, 0
      %v644 = vsel %vm533, %v636, 0
      %646 = vmatprep.subr.mxu0 0.0
      %647 = vmatpush1.msra.mxu0 0.0
      %648 = vmatprep.subr.mxu0 0.0
      %649 = vmatpush1.msra.mxu0 0.0
      %650 = vmatprep.subr.mxu0 0.0
      %651 = vmatpush1.msra.mxu0 0.0
      %652 = vmatprep.subr.mxu0 0.0
      %653 = vmatpush1.msra.mxu0 0.0
      %654 = vmatprep.subr.mxu0 0.0
      %655 = vmatpush1.msra.mxu0 0.0
      %656 = vmatprep.subr.mxu0 0.0
      %657 = vmatpush1.msra.mxu0 0.0
      %658 = vmatprep.subr.mxu0 0.0
      %659 = vmatpush1.msra.mxu0 0.0
      %660 = vmatprep.subr.mxu0 0.0
      %661 = vmatpush1.msra.mxu0 0.0
      %662 = vmatprep.subr.mxu0 0.0
      %663 = vmatpush1.msra.mxu0 0.0
      %664 = vmatprep.subr.mxu0 0.0
      %665 = vmatpush1.msra.mxu0 0.0
      %666 = vmatprep.subr.mxu0 0.0
      %667 = vmatpush1.msra.mxu0 0.0
      %668 = vmatprep.subr.mxu0 0.0
      %669 = vmatpush1.msra.mxu0 0.0
      %670 = vmatprep.subr.mxu0 0.0
      %671 = vmatpush1.msra.mxu0 0.0
      %672 = vmatprep.subr.mxu0 0.0
      %673 = vmatpush1.msra.mxu0 0.0
      %674 = vmatprep.subr.mxu0 0.0
      %675 = vmatpush1.msra.mxu0 %v639
      %676 = vmatprep.subr.mxu0 0.0
      %677 = vmatpush1.msra.mxu0 %v638
      %678 = vmatprep.subr.mxu0 0.0
      %679 = vmatpush2.msra.mxu0 0.0
      %680 = vmatprep.subr.mxu0 0.0
      %681 = vmatpush2.msra.mxu0 0.0
      %682 = vmatprep.subr.mxu0 0.0
      %683 = vmatpush2.msra.mxu0 0.0
      %684 = vmatprep.subr.mxu0 0.0
      %685 = vmatpush2.msra.mxu0 0.0
      %686 = vmatprep.subr.mxu0 0.0
      %687 = vmatpush2.msra.mxu0 0.0
      %688 = vmatprep.subr.mxu0 0.0
      %689 = vmatpush2.msra.mxu0 0.0
      %690 = vmatprep.subr.mxu0 0.0
      %691 = vmatpush2.msra.mxu0 0.0
      %692 = vmatprep.subr.mxu0 0.0
      %693 = vmatpush2.msra.mxu0 0.0
      %694 = vmatprep.subr.mxu0 0.0
      %695 = vmatpush2.msra.mxu0 0.0
      %696 = vmatprep.subr.mxu0 0.0
      %697 = vmatpush2.msra.mxu0 0.0
      %698 = vmatprep.subr.mxu0 0.0
      %699 = vmatpush2.msra.mxu0 0.0
      %700 = vmatprep.subr.mxu0 0.0
      %701 = vmatpush2.msra.mxu0 0.0
      %702 = vmatprep.subr.mxu0 0.0
      %703 = vmatpush2.msra.mxu0 0.0
      %704 = vmatprep.subr.mxu0 0.0
      %705 = vmatpush2.msra.mxu0 0.0
      %706 = vmatprep.subr.mxu0 0.0
      %707 = vmatpush2.msra.mxu0 0.0
      %708 = vmatprep.subr.mxu0 0.0
      %709 = vmatpush2.msra.mxu0 0.0
      %710 = vmatprep.mubr.f32.mxu0 0.0
      %711 = vmatmul.mubr.f32.gmra.mxu0 %v641
      %v712 = vpop.f32.mrf.mxu0
      %v713 = vadd.f32 0.0, %v712
      %v714 = vpop.f32.mrf.mxu0
      %715 = vmatprep.mubr.f32.mxu0 0.0
      %716 = vmatmul.mubr.f32.gmra.mxu0 %v644
      %v717 = vpop.f32.mrf.mxu0
      %v718 = vadd.f32 0.0, %v717
      %v719 = vpop.f32.mrf.mxu0
      %720 = vdwg.mxu0
      %v721 = vadd.f32 %v631, %v713
      %v722 = vadd.f32 %v632, %v718
      %s723 = scalar_lea.vmem [#allocation3], 2
      %v724 = vld [vmem:[%s723] ss:$2 sm:$0xff]
      %s725 = scalar_lea.vmem [#allocation3], 18
      %v726 = vld [vmem:[%s725] ss:$2 sm:$0xff]
      %s727 = scalar_lea.vmem %s3, 32
      %v728 = vld [vmem:[%s727] sm:$0xff]
      %v729 = vld [vmem:[%s727 + $0x8] sm:$0xff]
      %v731 = vsel %vm533, %v724, 0
      %v734 = vsel %vm533, %v726, 0
      %736 = vmatprep.subr.mxu0 0.0
      %737 = vmatpush1.msra.mxu0 0.0
      %738 = vmatprep.subr.mxu0 0.0
      %739 = vmatpush1.msra.mxu0 0.0
      %740 = vmatprep.subr.mxu0 0.0
      %741 = vmatpush1.msra.mxu0 0.0
      %742 = vmatprep.subr.mxu0 0.0
      %743 = vmatpush1.msra.mxu0 0.0
      %744 = vmatprep.subr.mxu0 0.0
      %745 = vmatpush1.msra.mxu0 0.0
      %746 = vmatprep.subr.mxu0 0.0
      %747 = vmatpush1.msra.mxu0 0.0
      %748 = vmatprep.subr.mxu0 0.0
      %749 = vmatpush1.msra.mxu0 0.0
      %750 = vmatprep.subr.mxu0 0.0
      %751 = vmatpush1.msra.mxu0 0.0
      %752 = vmatprep.subr.mxu0 0.0
      %753 = vmatpush1.msra.mxu0 0.0
      %754 = vmatprep.subr.mxu0 0.0
      %755 = vmatpush1.msra.mxu0 0.0
      %756 = vmatprep.subr.mxu0 0.0
      %757 = vmatpush1.msra.mxu0 0.0
      %758 = vmatprep.subr.mxu0 0.0
      %759 = vmatpush1.msra.mxu0 0.0
      %760 = vmatprep.subr.mxu0 0.0
      %761 = vmatpush1.msra.mxu0 0.0
      %762 = vmatprep.subr.mxu0 0.0
      %763 = vmatpush1.msra.mxu0 0.0
      %764 = vmatprep.subr.mxu0 0.0
      %765 = vmatpush1.msra.mxu0 %v729
      %766 = vmatprep.subr.mxu0 0.0
      %767 = vmatpush1.msra.mxu0 %v728
      %768 = vmatprep.subr.mxu0 0.0
      %769 = vmatpush2.msra.mxu0 0.0
      %770 = vmatprep.subr.mxu0 0.0
      %771 = vmatpush2.msra.mxu0 0.0
      %772 = vmatprep.subr.mxu0 0.0
      %773 = vmatpush2.msra.mxu0 0.0
      %774 = vmatprep.subr.mxu0 0.0
      %775 = vmatpush2.msra.mxu0 0.0
      %776 = vmatprep.subr.mxu0 0.0
      %777 = vmatpush2.msra.mxu0 0.0
      %778 = vmatprep.subr.mxu0 0.0
      %779 = vmatpush2.msra.mxu0 0.0
      %780 = vmatprep.subr.mxu0 0.0
      %781 = vmatpush2.msra.mxu0 0.0
      %782 = vmatprep.subr.mxu0 0.0
      %783 = vmatpush2.msra.mxu0 0.0
      %784 = vmatprep.subr.mxu0 0.0
      %785 = vmatpush2.msra.mxu0 0.0
      %786 = vmatprep.subr.mxu0 0.0
      %787 = vmatpush2.msra.mxu0 0.0
      %788 = vmatprep.subr.mxu0 0.0
      %789 = vmatpush2.msra.mxu0 0.0
      %790 = vmatprep.subr.mxu0 0.0
      %791 = vmatpush2.msra.mxu0 0.0
      %792 = vmatprep.subr.mxu0 0.0
      %793 = vmatpush2.msra.mxu0 0.0
      %794 = vmatprep.subr.mxu0 0.0
      %795 = vmatpush2.msra.mxu0 0.0
      %796 = vmatprep.subr.mxu0 0.0
      %797 = vmatpush2.msra.mxu0 0.0
      %798 = vmatprep.subr.mxu0 0.0
      %799 = vmatpush2.msra.mxu0 0.0
      %800 = vmatprep.mubr.f32.mxu0 0.0
      %801 = vmatmul.mubr.f32.gmra.mxu0 %v731
      %v802 = vpop.f32.mrf.mxu0
      %v803 = vadd.f32 0.0, %v802
      %v804 = vpop.f32.mrf.mxu0
      %805 = vmatprep.mubr.f32.mxu0 0.0
      %806 = vmatmul.mubr.f32.gmra.mxu0 %v734
      %v807 = vpop.f32.mrf.mxu0
      %v808 = vadd.f32 0.0, %v807
      %v809 = vpop.f32.mrf.mxu0
      %810 = vdwg.mxu0
      %v811 = vadd.f32 %v721, %v803
      %v812 = vadd.f32 %v722, %v808
      %s813 = scalar_lea.vmem [#allocation3], 3
      %v814 = vld [vmem:[%s813] ss:$2 sm:$0xff]
      %s815 = scalar_lea.vmem [#allocation3], 19
      %v816 = vld [vmem:[%s815] ss:$2 sm:$0xff]
      %s817 = scalar_lea.vmem %s3, 48
      %v818 = vld [vmem:[%s817] sm:$0xff]
      %v819 = vld [vmem:[%s817 + $0x8] sm:$0xff]
      %v821 = vsel %vm533, %v814, 0
      %v824 = vsel %vm533, %v816, 0
      %826 = vmatprep.subr.mxu0 0.0
      %827 = vmatpush1.msra.mxu0 0.0
      %828 = vmatprep.subr.mxu0 0.0
      %829 = vmatpush1.msra.mxu0 0.0
      %830 = vmatprep.subr.mxu0 0.0
      %831 = vmatpush1.msra.mxu0 0.0
      %832 = vmatprep.subr.mxu0 0.0
      %833 = vmatpush1.msra.mxu0 0.0
      %834 = vmatprep.subr.mxu0 0.0
      %835 = vmatpush1.msra.mxu0 0.0
      %836 = vmatprep.subr.mxu0 0.0
      %837 = vmatpush1.msra.mxu0 0.0
      %838 = vmatprep.subr.mxu0 0.0
      %839 = vmatpush1.msra.mxu0 0.0
      %840 = vmatprep.subr.mxu0 0.0
      %841 = vmatpush1.msra.mxu0 0.0
      %842 = vmatprep.subr.mxu0 0.0
      %843 = vmatpush1.msra.mxu0 0.0
      %844 = vmatprep.subr.mxu0 0.0
      %845 = vmatpush1.msra.mxu0 0.0
      %846 = vmatprep.subr.mxu0 0.0
      %847 = vmatpush1.msra.mxu0 0.0
      %848 = vmatprep.subr.mxu0 0.0
      %849 = vmatpush1.msra.mxu0 0.0
      %850 = vmatprep.subr.mxu0 0.0
      %851 = vmatpush1.msra.mxu0 0.0
      %852 = vmatprep.subr.mxu0 0.0
      %853 = vmatpush1.msra.mxu0 0.0
      %854 = vmatprep.subr.mxu0 0.0
      %855 = vmatpush1.msra.mxu0 %v819
      %856 = vmatprep.subr.mxu0 0.0
      %857 = vmatpush1.msra.mxu0 %v818
      %858 = vmatprep.subr.mxu0 0.0
      %859 = vmatpush2.msra.mxu0 0.0
      %860 = vmatprep.subr.mxu0 0.0
      %861 = vmatpush2.msra.mxu0 0.0
      %862 = vmatprep.subr.mxu0 0.0
      %863 = vmatpush2.msra.mxu0 0.0
      %864 = vmatprep.subr.mxu0 0.0
      %865 = vmatpush2.msra.mxu0 0.0
      %866 = vmatprep.subr.mxu0 0.0
      %867 = vmatpush2.msra.mxu0 0.0
      %868 = vmatprep.subr.mxu0 0.0
      %869 = vmatpush2.msra.mxu0 0.0
      %870 = vmatprep.subr.mxu0 0.0
      %871 = vmatpush2.msra.mxu0 0.0
      %872 = vmatprep.subr.mxu0 0.0
      %873 = vmatpush2.msra.mxu0 0.0
      %874 = vmatprep.subr.mxu0 0.0
      %875 = vmatpush2.msra.mxu0 0.0
      %876 = vmatprep.subr.mxu0 0.0
      %877 = vmatpush2.msra.mxu0 0.0
      %878 = vmatprep.subr.mxu0 0.0
      %879 = vmatpush2.msra.mxu0 0.0
      %880 = vmatprep.subr.mxu0 0.0
      %881 = vmatpush2.msra.mxu0 0.0
      %882 = vmatprep.subr.mxu0 0.0
      %883 = vmatpush2.msra.mxu0 0.0
      %884 = vmatprep.subr.mxu0 0.0
      %885 = vmatpush2.msra.mxu0 0.0
      %886 = vmatprep.subr.mxu0 0.0
      %887 = vmatpush2.msra.mxu0 0.0
      %888 = vmatprep.subr.mxu0 0.0
      %889 = vmatpush2.msra.mxu0 0.0
      %890 = vmatprep.mubr.f32.mxu0 0.0
      %891 = vmatmul.mubr.f32.gmra.mxu0 %v821
      %v892 = vpop.f32.mrf.mxu0
      %v893 = vadd.f32 0.0, %v892
      %v894 = vpop.f32.mrf.mxu0
      %895 = vmatprep.mubr.f32.mxu0 0.0
      %896 = vmatmul.mubr.f32.gmra.mxu0 %v824
      %v897 = vpop.f32.mrf.mxu0
      %v898 = vadd.f32 0.0, %v897
      %v899 = vpop.f32.mrf.mxu0
      %900 = vdwg.mxu0
      %v901 = vadd.f32 %v811, %v893
      %v902 = vadd.f32 %v812, %v898
      %s903 = scalar_lea.vmem [#allocation3], 4
      %v904 = vld [vmem:[%s903] ss:$2 sm:$0xff]
      %s905 = scalar_lea.vmem [#allocation3], 20
      %v906 = vld [vmem:[%s905] ss:$2 sm:$0xff]
      %s907 = scalar_lea.vmem %s3, 64
      %v908 = vld [vmem:[%s907] sm:$0xff]
      %v909 = vld [vmem:[%s907 + $0x8] sm:$0xff]
      %v911 = vsel %vm533, %v904, 0
      %v914 = vsel %vm533, %v906, 0
      %916 = vmatprep.subr.mxu0 0.0
      %917 = vmatpush1.msra.mxu0 0.0
      %918 = vmatprep.subr.mxu0 0.0
      %919 = vmatpush1.msra.mxu0 0.0
      %920 = vmatprep.subr.mxu0 0.0
      %921 = vmatpush1.msra.mxu0 0.0
      %922 = vmatprep.subr.mxu0 0.0
      %923 = vmatpush1.msra.mxu0 0.0
      %924 = vmatprep.subr.mxu0 0.0
      %925 = vmatpush1.msra.mxu0 0.0
      %926 = vmatprep.subr.mxu0 0.0
      %927 = vmatpush1.msra.mxu0 0.0
      %928 = vmatprep.subr.mxu0 0.0
      %929 = vmatpush1.msra.mxu0 0.0
      %930 = vmatprep.subr.mxu0 0.0
      %931 = vmatpush1.msra.mxu0 0.0
      %932 = vmatprep.subr.mxu0 0.0
      %933 = vmatpush1.msra.mxu0 0.0
      %934 = vmatprep.subr.mxu0 0.0
      %935 = vmatpush1.msra.mxu0 0.0
      %936 = vmatprep.subr.mxu0 0.0
      %937 = vmatpush1.msra.mxu0 0.0
      %938 = vmatprep.subr.mxu0 0.0
      %939 = vmatpush1.msra.mxu0 0.0
      %940 = vmatprep.subr.mxu0 0.0
      %941 = vmatpush1.msra.mxu0 0.0
      %942 = vmatprep.subr.mxu0 0.0
      %943 = vmatpush1.msra.mxu0 0.0
      %944 = vmatprep.subr.mxu0 0.0
      %945 = vmatpush1.msra.mxu0 %v909
      %946 = vmatprep.subr.mxu0 0.0
      %947 = vmatpush1.msra.mxu0 %v908
      %948 = vmatprep.subr.mxu0 0.0
      %949 = vmatpush2.msra.mxu0 0.0
      %950 = vmatprep.subr.mxu0 0.0
      %951 = vmatpush2.msra.mxu0 0.0
      %952 = vmatprep.subr.mxu0 0.0
      %953 = vmatpush2.msra.mxu0 0.0
      %954 = vmatprep.subr.mxu0 0.0
      %955 = vmatpush2.msra.mxu0 0.0
      %956 = vmatprep.subr.mxu0 0.0
      %957 = vmatpush2.msra.mxu0 0.0
      %958 = vmatprep.subr.mxu0 0.0
      %959 = vmatpush2.msra.mxu0 0.0
      %960 = vmatprep.subr.mxu0 0.0
      %961 = vmatpush2.msra.mxu0 0.0
      %962 = vmatprep.subr.mxu0 0.0
      %963 = vmatpush2.msra.mxu0 0.0
      %964 = vmatprep.subr.mxu0 0.0
      %965 = vmatpush2.msra.mxu0 0.0
      %966 = vmatprep.subr.mxu0 0.0
      %967 = vmatpush2.msra.mxu0 0.0
      %968 = vmatprep.subr.mxu0 0.0
      %969 = vmatpush2.msra.mxu0 0.0
      %970 = vmatprep.subr.mxu0 0.0
      %971 = vmatpush2.msra.mxu0 0.0
      %972 = vmatprep.subr.mxu0 0.0
      %973 = vmatpush2.msra.mxu0 0.0
      %974 = vmatprep.subr.mxu0 0.0
      %975 = vmatpush2.msra.mxu0 0.0
      %976 = vmatprep.subr.mxu0 0.0
      %977 = vmatpush2.msra.mxu0 0.0
      %978 = vmatprep.subr.mxu0 0.0
      %979 = vmatpush2.msra.mxu0 0.0
      %980 = vmatprep.mubr.f32.mxu0 0.0
      %981 = vmatmul.mubr.f32.gmra.mxu0 %v911
      %v982 = vpop.f32.mrf.mxu0
      %v983 = vadd.f32 0.0, %v982
      %v984 = vpop.f32.mrf.mxu0
      %985 = vmatprep.mubr.f32.mxu0 0.0
      %986 = vmatmul.mubr.f32.gmra.mxu0 %v914
      %v987 = vpop.f32.mrf.mxu0
      %v988 = vadd.f32 0.0, %v987
      %v989 = vpop.f32.mrf.mxu0
      %990 = vdwg.mxu0
      %v991 = vadd.f32 %v901, %v983
      %v992 = vadd.f32 %v902, %v988
      %v993 = vmax.f32 %v991, 0.0
      %v994 = vmax.f32 %v992, 0.0
      %vm995 = vcmask 122880
      %996 = vst.msk [vmem:[#allocation4] sm:$0x1] %vm995, 0.0
      %997 = vst.msk [vmem:[#allocation4 + $0x11] sm:$0x1] %vm995, 0.0
      %998 = vst.msk [vmem:[#allocation4 + $0x1] sm:$0xff] %vm533, %v993
      %999 = vst.msk [vmem:[#allocation4 + $0x9] sm:$0xff] %vm533, %v994
      %v1000 = vld [vmem:[#allocation4] sm:$0xff]
      %v1001 = vld [vmem:[#allocation4 + $0x8] sm:$0xff]
      %v1002 = vld [vmem:[%s5] sm:$0x1]
      %v1004 = vlaneseq
      %v1005 = vshrl.u32 %v1004, 7
      %v1006 = vsub.s32 0, %v1005
      %v1007 = vrot.slane %v1002, %v1006
      %v1009 = vmul.f32 %v1000, %v1007
      %v1010 = vmul.f32 %v1001, %v1007
      %v1011 = vadd.f32 %v1009, 0.0
      %v1012 = vadd.f32 %v1010, 0.0
      %v1013 = vld [vmem:[#allocation4 + $0x1] sm:$0xff]
      %v1014 = vld [vmem:[#allocation4 + $0x9] sm:$0xff]
      %s1015 = scalar_lea.vmem %s5, 1
      %v1016 = vld [vmem:[%s1015] sm:$0x1]
      %v1018 = vlaneseq
      %v1019 = vshrl.u32 %v1018, 7
      %v1020 = vsub.s32 0, %v1019
      %v1021 = vrot.slane %v1016, %v1020
      %v1023 = vmul.f32 %v1013, %v1021
      %v1024 = vmul.f32 %v1014, %v1021
      %v1025 = vadd.f32 %v1011, %v1023
      %v1026 = vadd.f32 %v1012, %v1024
      %v1027 = vld [vmem:[#allocation4 + $0x2] sm:$0xff]
      %v1028 = vld [vmem:[#allocation4 + $0xa] sm:$0xff]
      %s1029 = scalar_lea.vmem %s5, 2
      %v1030 = vld [vmem:[%s1029] sm:$0x1]
      %v1032 = vlaneseq
      %v1033 = vshrl.u32 %v1032, 7
      %v1034 = vsub.s32 0, %v1033
      %v1035 = vrot.slane %v1030, %v1034
      %v1037 = vmul.f32 %v1027, %v1035
      %v1038 = vmul.f32 %v1028, %v1035
      %v1039 = vadd.f32 %v1025, %v1037
      %v1040 = vadd.f32 %v1026, %v1038
      %v1041 = vsel %vm533, %v1039, 0.0
      %1042 = vadd.xlane.f32.xlu0 %v1041
      %v1043 = vpop.xlane.xlu0 %1042
      %v1044 = vsel %vm533, %v1040, 0.0
      %1045 = vadd.xlane.f32.xlu0 %v1044
      %v1046 = vpop.xlane.xlu0 %1045
      %v1047 = vld [vmem:[#allocation5] sm:$0x1]
      %v1049 = vlaneseq
      %v1050 = vshrl.u32 %v1049, 7
      %v1051 = vsub.s32 0, %v1050
      %v1052 = vrot.slane %v1047, %v1051
      %v1054 = vadd.f32 %v1043, %v1052
      %v1055 = vadd.f32 %v1046, %v1052
      %1056 = vst.msk [vmem:[%s280] sm:$0xff] %vm292, %v1054
      %1057 = vst.msk [vmem:[%s280 + $0x8] sm:$0xff] %vm292, %v1055
      %p1058 = scmp.lt.s32.totalorder %s20, 1
      %s1059 = scalar_select %p1058, %s20, 1
      %s1060 = smul.addr %s1059, 2
      %s1061 = smul.addr %s1060, 8
      %s1062 = scalar_lea.vmem %s7, %s1061
      // Predicated region
      $region49: #{my_encoder_forward.1} parent=47 // pred_check
        %p1063 = pneg %p190
      $region50: #{my_encoder_forward.1} parent=47 // pred_check_branch
        %1065 = sbr.rel (%p1063) target = $region52
      $region51: #{my_encoder_forward.1} parent=47 // pred_region
        _
      $region52: #{my_encoder_forward.1} parent=47 // pred_fallthru
        _
    $region48: #{my_encoder_forward.1} parent=5 // pred_fallthru
      _
    %p1066 = scmp.le.s32.totalorder 2, %s15
    // Predicated region
    $region53: #{my_encoder_forward.1} parent=5 // pred_check
      %p1067 = pneg %p1066
    $region54: #{my_encoder_forward.1} parent=5 // pred_check_branch
      %1069 = sbr.rel (%p1067) target = $region56
    $region55: #{my_encoder_forward.1} parent=5 // pred_region
      %s1070 = ssub.s32 %s15, 2
      // Predicated region
      $region57: #{my_encoder_forward.1} parent=55 // pred_check
        %p1071 = pneg %p196
      $region58: #{my_encoder_forward.1} parent=55 // pred_check_branch
        %1073 = sbr.rel (%p1071) target = $region60
      $region59: #{my_encoder_forward.1} parent=55 // pred_region
        %p1074 = scmp.lt.s32.totalorder %s21, 1
        %s1075 = scalar_select %p1074, %s21, 1
        %s1076 = smul.addr %s1075, 2
        %s1077 = smul.addr %s1076, 8
        %s1078 = scalar_lea.vmem %s7, %s1077
      $region60: #{my_encoder_forward.1} parent=55 // pred_fallthru
        _
    $region56: #{my_encoder_forward.1} parent=5 // pred_fallthru
      _
  $region6: #{my_encoder_forward.1} parent=0 // loop_footer
    %s19 = sadd.s32 1, %s15
  $region7: #{my_encoder_forward.1} parent=0 // loop_footer_branch
    %14 = sbr.rel target = $region3
  $region8: #{my_encoder_forward.1} parent=0 // loop_exit
    _

</llo_original>
